<compile_context>
chip_gen: v7x
topology: tpu7x:2x2x1
jax: 0.10.0
libtpu: 0.0.40
codegen_flags: <defaults>
</compile_context>

<pallas_src>
import jax
import jax.numpy as jnp
from jax import lax
from jax.experimental import pallas as pl
from jax.experimental.pallas import tpu as pltpu

D_IN, D_H1, D_H2, D_OUT = 256, 128, 64, 19
D_OUT_PAD = 128  # lane-dense output width (sliced back to 19 in the wrapper)


def _round_up(n, m):
    return ((n + m - 1) // m) * m


def _cdiv(a, b):
    return -(-a // b)


# --------------------------------------------------------------------------
# Pallas kernel: fused 3-layer MLP (Linear+ReLU, Linear+ReLU, Linear)
# --------------------------------------------------------------------------
def _decoder_kernel(x_ref, w1_ref, b1_ref, w2_ref, b2_ref, w3_ref, b3_ref,
                    o_ref):
    # bf16 operands on the MXU, f32 accumulation; bias add / ReLU in f32.
    x = x_ref[...].astype(jnp.bfloat16)
    h = jnp.dot(x, w1_ref[...], preferred_element_type=jnp.float32)
    h = jnp.maximum(h + b1_ref[...], 0.0)
    h = jnp.dot(h.astype(jnp.bfloat16), w2_ref[...],
                preferred_element_type=jnp.float32)
    h = jnp.maximum(h + b2_ref[...], 0.0)
    o = jnp.dot(h.astype(jnp.bfloat16), w3_ref[...],
                preferred_element_type=jnp.float32)
    o_ref[...] = (o + b3_ref[...]).astype(o_ref.dtype)


def decoder_forward(x, params, *, tm=1024):
    """Decoder.forward: x (M, 256) -> (M, 19).

    Weights are stored pre-transposed vs torch: w has shape (in, out), so the
    affine map is x @ w + b (same semantics as nn.Linear(x) = x @ W.T + b).
    """
    M, K = x.shape
    assert K == D_IN, f"expected input dim {D_IN}, got {K}"

    # Tiny batches: pad to one full sublane group (8 rows); cheap.
    m = M
    if m < 8:
        x = jnp.pad(x, ((0, 8 - m), (0, 0)))
        m = 8

    # Batch-tile selection. Per-grid-step overhead is ~0.35us and larger
    # blocks track the HBM roofline better, so use big tiles; mid-size batches
    # are split into 2 tiles so both v7x TensorCores get work. Ragged tails
    # are handled by Pallas (no full-array pad: rows are independent and OOB
    # output rows are discarded).
    if m <= 512:
        tm_eff = _round_up(m, 8)                  # single grid step
    elif m <= 2 * tm:
        tm_eff = _round_up(_cdiv(m, 2), 8)        # two steps (both v7x TCs)
    else:
        tm_eff = tm
    grid_m = _cdiv(m, tm_eff)

    # bf16 weights for the MXU; biases stay f32 (added post-accumulation).
    w1 = params["w1"].astype(jnp.bfloat16)
    w2 = params["w2"].astype(jnp.bfloat16)
    w3 = params["w3"].astype(jnp.bfloat16)
    b1 = params["b1"].reshape(1, -1).astype(jnp.float32)
    b2 = params["b2"].reshape(1, -1).astype(jnp.float32)
    b3 = params["b3"].reshape(1, -1).astype(jnp.float32)

    # Lane-dense output: zero-pad layer-3 out-dim 19 -> 128 (unmasked stores);
    # the padded columns are exactly zero and sliced away below.
    w3 = jnp.pad(w3, ((0, 0), (0, D_OUT_PAD - D_OUT)))
    b3 = jnp.pad(b3, ((0, 0), (0, D_OUT_PAD - D_OUT)))

    flops = 2 * m * (D_IN * D_H1 + D_H1 * D_H2 + D_H2 * D_OUT_PAD)
    bytes_accessed = (
        m * D_IN * x.dtype.itemsize                     # activations in
        + (w1.size + w2.size + w3.size) * 2             # bf16 weights
        + (b1.size + b2.size + b3.size) * 4              # f32 biases
        + m * D_OUT_PAD * 4)                             # f32 output

    out = pl.pallas_call(
        _decoder_kernel,
        out_shape=jax.ShapeDtypeStruct((m, D_OUT_PAD), jnp.float32),
        grid=(grid_m,),
        in_specs=[
            pl.BlockSpec((tm_eff, D_IN), lambda i: (i, 0)),    # activations
            pl.BlockSpec((D_IN, D_H1), lambda i: (0, 0)),      # w1 (resident)
            pl.BlockSpec((1, D_H1), lambda i: (0, 0)),         # b1
            pl.BlockSpec((D_H1, D_H2), lambda i: (0, 0)),      # w2
            pl.BlockSpec((1, D_H2), lambda i: (0, 0)),         # b2
            pl.BlockSpec((D_H2, D_OUT_PAD), lambda i: (0, 0)), # w3 (padded)
            pl.BlockSpec((1, D_OUT_PAD), lambda i: (0, 0)),    # b3 (padded)
        ],
        out_specs=pl.BlockSpec((tm_eff, D_OUT_PAD), lambda i: (i, 0)),
        compiler_params=pltpu.CompilerParams(
            dimension_semantics=("parallel",)),
        cost_estimate=pl.CostEstimate(
            flops=flops, transcendentals=0, bytes_accessed=bytes_accessed),
    )(x, w1, b1, w2, b2, w3, b3)

    return out[:M, :D_OUT]


# --------------------------------------------------------------------------
# Pure-JAX reference (exact f32) and param init mirroring nn.Linear defaults
# --------------------------------------------------------------------------
def decoder_reference(x, params):
    hp = lax.Precision.HIGHEST
    h = jnp.maximum(
        jnp.dot(x, params["w1"], precision=hp) + params["b1"], 0.0)
    h = jnp.maximum(
        jnp.dot(h, params["w2"], precision=hp) + params["b2"], 0.0)
    return jnp.dot(h, params["w3"], precision=hp) + params["b3"]


def init_params(key):
    ks = jax.random.split(key, 6)

    def linear(kw, kb, fan_in, fan_out):
        bound = 1.0 / (fan_in ** 0.5)
        w = jax.random.uniform(kw, (fan_in, fan_out), jnp.float32,
                               -bound, bound)
        b = jax.random.uniform(kb, (fan_out,), jnp.float32, -bound, bound)
        return w, b

    w1, b1 = linear(ks[0], ks[1], D_IN, D_H1)
    w2, b2 = linear(ks[2], ks[3], D_H1, D_H2)
    w3, b3 = linear(ks[4], ks[5], D_H2, D_OUT)
    return dict(w1=w1, b1=b1, w2=w2, b2=b2, w3=w3, b3=b3)


def _check(out, ref):
    assert out.shape == ref.shape, (out.shape, ref.shape)
    assert out.dtype == jnp.float32
    assert bool(jnp.all(jnp.isfinite(out)))
    assert bool(jnp.allclose(out, ref, atol=2e-2, rtol=2e-2)), (
        float(jnp.max(jnp.abs(out - ref))))


if __name__ == "__main__":
    key = jax.random.PRNGKey(0)
    kx1, kx2, kx3, kp = jax.random.split(key, 4)
    params = init_params(kp)

    fwd = jax.jit(decoder_forward)

    # Tiny batch: single padded block (pad-to-8 path).
    x_small = jax.random.normal(kx1, (2, D_IN), jnp.float32)
    out_small = fwd(x_small, params)
    jax.block_until_ready(out_small)
    assert out_small.shape == (2, D_OUT), out_small.shape
    _check(out_small, decoder_reference(x_small, params))

    # Ragged mid-size batch: two grid steps, ragged final block, no full pad.
    x_mid = jax.random.normal(kx2, (257, D_IN), jnp.float32)
    out_mid = fwd(x_mid, params)
    jax.block_until_ready(out_mid)
    assert out_mid.shape == (257, D_OUT), out_mid.shape
    _check(out_mid, decoder_reference(x_mid, params))

    # Larger ragged batch: tm=1024 tiles, 3 grid steps, ragged tail.
    x_big = jax.random.normal(kx3, (2305, D_IN), jnp.float32)
    out_big = fwd(x_big, params)
    jax.block_until_ready(out_big)
    assert out_big.shape == (2305, D_OUT), out_big.shape
    _check(out_big, decoder_reference(x_big, params))

    print("KERNEL_OK")
</pallas_src>

<mosaic_0001>
module attributes {stable_mosaic.version = 11 : i64} {
  func.func @_decoder_kernel(%arg0: i32, %arg1: memref<8x256xf32, #tpu.memory_space<vmem>>, %arg2: memref<256x128xbf16, #tpu.memory_space<vmem>>, %arg3: memref<1x128xf32, #tpu.memory_space<vmem>>, %arg4: memref<128x64xbf16, #tpu.memory_space<vmem>>, %arg5: memref<1x64xf32, #tpu.memory_space<vmem>>, %arg6: memref<64x128xbf16, #tpu.memory_space<vmem>>, %arg7: memref<1x128xf32, #tpu.memory_space<vmem>>, %arg8: memref<8x128xf32, #tpu.memory_space<vmem>>) attributes {dimension_semantics = [#tpu.dimension_semantics<parallel>], iteration_bounds = array<i64: 1>, scalar_prefetch = 0 : i64, scratch_operands = 0 : i64, tpu.core_type = #tpu.core_type<tc>, window_params = [{transform_indices = @transform_0, window_bounds = array<i64: 8, 256>}, {pipeline_mode = #tpu.pipeline_mode<synchronous>, transform_indices = @transform_1, window_bounds = array<i64: 256, 128>}, {pipeline_mode = #tpu.pipeline_mode<synchronous>, transform_indices = @transform_2, window_bounds = array<i64: 1, 128>}, {pipeline_mode = #tpu.pipeline_mode<synchronous>, transform_indices = @transform_3, window_bounds = array<i64: 128, 64>}, {pipeline_mode = #tpu.pipeline_mode<synchronous>, transform_indices = @transform_4, window_bounds = array<i64: 1, 64>}, {pipeline_mode = #tpu.pipeline_mode<synchronous>, transform_indices = @transform_5, window_bounds = array<i64: 64, 128>}, {pipeline_mode = #tpu.pipeline_mode<synchronous>, transform_indices = @transform_6, window_bounds = array<i64: 1, 128>}, {transform_indices = @transform_7, window_bounds = array<i64: 8, 128>}]} {
    %c0 = arith.constant 0 : index
    %c0_0 = arith.constant 0 : index
    %0 = vector.load %arg1[%c0, %c0_0] : memref<8x256xf32, #tpu.memory_space<vmem>>, vector<8x256xf32>
    %1 = arith.truncf %0 : vector<8x256xf32> to vector<8x256xbf16>
    %c0_1 = arith.constant 0 : index
    %c0_2 = arith.constant 0 : index
    %2 = vector.load %arg2[%c0_1, %c0_2] : memref<256x128xbf16, #tpu.memory_space<vmem>>, vector<256x128xbf16>
    %cst = arith.constant dense<0.000000e+00> : vector<8x128xf32>
    %3 = tpu.matmul %1, %2, %cst {dimension_numbers = #tpu.dot_dimension_numbers<[1], [0], [0], [1], [0, 0, 1, 1], [], []>} : vector<8x256xbf16>, vector<256x128xbf16>, vector<8x128xf32> -> vector<8x128xf32>
    %c0_3 = arith.constant 0 : index
    %c0_4 = arith.constant 0 : index
    %4 = vector.load %arg3[%c0_3, %c0_4] : memref<1x128xf32, #tpu.memory_space<vmem>>, vector<1x128xf32>
    %5 = vector.broadcast %4 : vector<1x128xf32> to vector<8x128xf32>
    %6 = arith.addf %3, %5 : vector<8x128xf32>
    %cst_5 = arith.constant 0.000000e+00 : f32
    %7 = vector.broadcast %cst_5 : f32 to vector<8x128xf32>
    %8 = arith.maximumf %6, %7 : vector<8x128xf32>
    %9 = arith.truncf %8 : vector<8x128xf32> to vector<8x128xbf16>
    %c0_6 = arith.constant 0 : index
    %c0_7 = arith.constant 0 : index
    %10 = vector.load %arg4[%c0_6, %c0_7] : memref<128x64xbf16, #tpu.memory_space<vmem>>, vector<128x64xbf16>
    %cst_8 = arith.constant dense<0.000000e+00> : vector<8x64xf32>
    %11 = tpu.matmul %9, %10, %cst_8 {dimension_numbers = #tpu.dot_dimension_numbers<[1], [0], [0], [1], [0, 0, 1, 1], [], []>} : vector<8x128xbf16>, vector<128x64xbf16>, vector<8x64xf32> -> vector<8x64xf32>
    %c0_9 = arith.constant 0 : index
    %c0_10 = arith.constant 0 : index
    %12 = vector.load %arg5[%c0_9, %c0_10] : memref<1x64xf32, #tpu.memory_space<vmem>>, vector<1x64xf32>
    %13 = vector.broadcast %12 : vector<1x64xf32> to vector<8x64xf32>
    %14 = arith.addf %11, %13 : vector<8x64xf32>
    %cst_11 = arith.constant 0.000000e+00 : f32
    %15 = vector.broadcast %cst_11 : f32 to vector<8x64xf32>
    %16 = arith.maximumf %14, %15 : vector<8x64xf32>
    %17 = arith.truncf %16 : vector<8x64xf32> to vector<8x64xbf16>
    %c0_12 = arith.constant 0 : index
    %c0_13 = arith.constant 0 : index
    %18 = vector.load %arg6[%c0_12, %c0_13] : memref<64x128xbf16, #tpu.memory_space<vmem>>, vector<64x128xbf16>
    %cst_14 = arith.constant dense<0.000000e+00> : vector<8x128xf32>
    %19 = tpu.matmul %17, %18, %cst_14 {dimension_numbers = #tpu.dot_dimension_numbers<[1], [0], [0], [1], [0, 0, 1, 1], [], []>} : vector<8x64xbf16>, vector<64x128xbf16>, vector<8x128xf32> -> vector<8x128xf32>
    %c0_15 = arith.constant 0 : index
    %c0_16 = arith.constant 0 : index
    %20 = vector.load %arg7[%c0_15, %c0_16] : memref<1x128xf32, #tpu.memory_space<vmem>>, vector<1x128xf32>
    %21 = vector.broadcast %20 : vector<1x128xf32> to vector<8x128xf32>
    %22 = arith.addf %19, %21 : vector<8x128xf32>
    %c0_17 = arith.constant 0 : index
    %c0_18 = arith.constant 0 : index
    %23 = vector.load %arg8[%c0_17, %c0_18] : memref<8x128xf32, #tpu.memory_space<vmem>>, vector<8x128xf32>
    tpu.vector_store %arg8[%c0_17, %c0_18], %22 {strides = array<i32>} : memref<8x128xf32, #tpu.memory_space<vmem>>, vector<8x128xf32>,
    return
  }
  func.func @transform_0(%arg0: i32) -> (i32, i32) {
    %c0_i32 = arith.constant 0 : i32
    %c0_i32_0 = arith.constant 0 : i32
    return %arg0, %c0_i32 : i32, i32
  }
  func.func @transform_1(%arg0: i32) -> (i32, i32) {
    %c0_i32 = arith.constant 0 : i32
    %c0_i32_0 = arith.constant 0 : i32
    %c0_i32_1 = arith.constant 0 : i32
    return %c0_i32, %c0_i32_0 : i32, i32
  }
  func.func @transform_2(%arg0: i32) -> (i32, i32) {
    %c0_i32 = arith.constant 0 : i32
    %c0_i32_0 = arith.constant 0 : i32
    %c0_i32_1 = arith.constant 0 : i32
    return %c0_i32, %c0_i32_0 : i32, i32
  }
  func.func @transform_3(%arg0: i32) -> (i32, i32) {
    %c0_i32 = arith.constant 0 : i32
    %c0_i32_0 = arith.constant 0 : i32
    %c0_i32_1 = arith.constant 0 : i32
    return %c0_i32, %c0_i32_0 : i32, i32
  }
  func.func @transform_4(%arg0: i32) -> (i32, i32) {
    %c0_i32 = arith.constant 0 : i32
    %c0_i32_0 = arith.constant 0 : i32
    %c0_i32_1 = arith.constant 0 : i32
    return %c0_i32, %c0_i32_0 : i32, i32
  }
  func.func @transform_5(%arg0: i32) -> (i32, i32) {
    %c0_i32 = arith.constant 0 : i32
    %c0_i32_0 = arith.constant 0 : i32
    %c0_i32_1 = arith.constant 0 : i32
    return %c0_i32, %c0_i32_0 : i32, i32
  }
  func.func @transform_6(%arg0: i32) -> (i32, i32) {
    %c0_i32 = arith.constant 0 : i32
    %c0_i32_0 = arith.constant 0 : i32
    %c0_i32_1 = arith.constant 0 : i32
    return %c0_i32, %c0_i32_0 : i32, i32
  }
  func.func @transform_7(%arg0: i32) -> (i32, i32) {
    %c0_i32 = arith.constant 0 : i32
    %c0_i32_0 = arith.constant 0 : i32
    return %arg0, %c0_i32 : i32, i32
  }
}

</mosaic_0001>

<llo_original>
// kernel: decoder_forward.1
$region0: #{decoder_forward.1}
  #allocation0 [shape = 'u32[]', space=smem, size = 0x4, offset = 0x4, fixed_abs, tag = 'smem constant byte address 0x4 - core index']
  #allocation1 [shape = 'u32[144,128]{1,0:T(1,128)}', space=vmem, size = 0x12000, scoped, tag = 'internal scratch']
  %s0 = inlined_call_operand.vmem [shape: f32[8,256], index: 0, kind: input, shape index: {}]
  %s1 = inlined_call_operand.vmem [shape: bf16[256,128], index: 1, kind: input, shape index: {}]
  %s2 = inlined_call_operand.vmem [shape: f32[1,128], index: 2, kind: input, shape index: {}]
  %s3 = inlined_call_operand.vmem [shape: bf16[128,64], index: 3, kind: input, shape index: {}]
  %s4 = inlined_call_operand.vmem [shape: f32[1,64], index: 4, kind: input, shape index: {}]
  %s5 = inlined_call_operand.vmem [shape: bf16[64,128], index: 5, kind: input, shape index: {}]
  %s6 = inlined_call_operand.vmem [shape: f32[1,128], index: 6, kind: input, shape index: {}]
  %s7 = inlined_call_operand.vmem [shape: f32[8,128], index: 7, kind: output, shape index: {}]
  %s8 = sld [smem:[#allocation0]]
  $region38: #{decoder_forward.1} parent=0
    _
  %s10 = ssub.s32 1, %s8
  %s11 = scalar_select 0, %s10, %s8
  // Predicated region
  $region2: #{decoder_forward.1} parent=0 // pred_check
    _
  $region3: #{decoder_forward.1} parent=0 // pred_check_branch
    %13 = sbr.rel (0) target = $region5
  $region4: #{decoder_forward.1} parent=0 // pred_region
    _
  $region5: #{decoder_forward.1} parent=0 // pred_fallthru
    _
  // Predicated region
  $region6: #{decoder_forward.1} parent=0 // pred_check
    _
  $region7: #{decoder_forward.1} parent=0 // pred_check_branch
    %15 = sbr.rel (0) target = $region9
  $region8: #{decoder_forward.1} parent=0 // pred_region
    _
  $region9: #{decoder_forward.1} parent=0 // pred_fallthru
    _
  // Predicated region
  $region10: #{decoder_forward.1} parent=0 // pred_check
    _
  $region11: #{decoder_forward.1} parent=0 // pred_check_branch
    %17 = sbr.rel (0) target = $region13
  $region12: #{decoder_forward.1} parent=0 // pred_region
    _
  $region13: #{decoder_forward.1} parent=0 // pred_fallthru
    _
  // Predicated region
  $region14: #{decoder_forward.1} parent=0 // pred_check
    _
  $region15: #{decoder_forward.1} parent=0 // pred_check_branch
    %19 = sbr.rel (0) target = $region17
  $region16: #{decoder_forward.1} parent=0 // pred_region
    _
  $region17: #{decoder_forward.1} parent=0 // pred_fallthru
    _
  // Predicated region
  $region18: #{decoder_forward.1} parent=0 // pred_check
    _
  $region19: #{decoder_forward.1} parent=0 // pred_check_branch
    %21 = sbr.rel (0) target = $region21
  $region20: #{decoder_forward.1} parent=0 // pred_region
    _
  $region21: #{decoder_forward.1} parent=0 // pred_fallthru
    _
  // Predicated region
  $region22: #{decoder_forward.1} parent=0 // pred_check
    _
  $region23: #{decoder_forward.1} parent=0 // pred_check_branch
    %23 = sbr.rel (0) target = $region25
  $region24: #{decoder_forward.1} parent=0 // pred_region
    _
  $region25: #{decoder_forward.1} parent=0 // pred_fallthru
    _
  // Predicated region
  $region26: #{decoder_forward.1} parent=0 // pred_check
    _
  $region27: #{decoder_forward.1} parent=0 // pred_check_branch
    %25 = sbr.rel (0) target = $region29
  $region28: #{decoder_forward.1} parent=0 // pred_region
    _
  $region29: #{decoder_forward.1} parent=0 // pred_fallthru
    _
  %v27 = vld [vmem:[%s0] sm:$0xff]
  %v28 = vld [vmem:[%s0 + $0x8] sm:$0xff]
  %v29 = vpack.c.bf16 %v27, %v27
  %v30 = vpack.c.bf16 %v28, %v28
  %v31 = vld [vmem:[%s1] sm:$0xf]
  %v32 = vld [vmem:[%s1 + $0x4] sm:$0xf]
  %v33 = vld [vmem:[%s1 + $0x8] sm:$0xf]
  %v34 = vld [vmem:[%s1 + $0xc] sm:$0xf]
  %v35 = vld [vmem:[%s1 + $0x10] sm:$0xf]
  %v36 = vld [vmem:[%s1 + $0x14] sm:$0xf]
  %v37 = vld [vmem:[%s1 + $0x18] sm:$0xf]
  %v38 = vld [vmem:[%s1 + $0x1c] sm:$0xf]
  %v39 = vld [vmem:[%s1 + $0x20] sm:$0xf]
  %v40 = vld [vmem:[%s1 + $0x24] sm:$0xf]
  %v41 = vld [vmem:[%s1 + $0x28] sm:$0xf]
  %v42 = vld [vmem:[%s1 + $0x2c] sm:$0xf]
  %v43 = vld [vmem:[%s1 + $0x30] sm:$0xf]
  %v44 = vld [vmem:[%s1 + $0x34] sm:$0xf]
  %v45 = vld [vmem:[%s1 + $0x38] sm:$0xf]
  %v46 = vld [vmem:[%s1 + $0x3c] sm:$0xf]
  %v47 = vld [vmem:[%s1 + $0x40] sm:$0xf]
  %v48 = vld [vmem:[%s1 + $0x44] sm:$0xf]
  %v49 = vld [vmem:[%s1 + $0x48] sm:$0xf]
  %v50 = vld [vmem:[%s1 + $0x4c] sm:$0xf]
  %v51 = vld [vmem:[%s1 + $0x50] sm:$0xf]
  %v52 = vld [vmem:[%s1 + $0x54] sm:$0xf]
  %v53 = vld [vmem:[%s1 + $0x58] sm:$0xf]
  %v54 = vld [vmem:[%s1 + $0x5c] sm:$0xf]
  %v55 = vld [vmem:[%s1 + $0x60] sm:$0xf]
  %v56 = vld [vmem:[%s1 + $0x64] sm:$0xf]
  %v57 = vld [vmem:[%s1 + $0x68] sm:$0xf]
  %v58 = vld [vmem:[%s1 + $0x6c] sm:$0xf]
  %v59 = vld [vmem:[%s1 + $0x70] sm:$0xf]
  %v60 = vld [vmem:[%s1 + $0x74] sm:$0xf]
  %v61 = vld [vmem:[%s1 + $0x78] sm:$0xf]
  %v62 = vld [vmem:[%s1 + $0x7c] sm:$0xf]
  %v63 = vld [vmem:[%s2] sm:$0x1]
  %v65 = vlaneseq
  %v66 = vshrl.u32 %v65, 7
  %v67 = vsub.s32 0, %v66
  %v68 = vrot.slane %v63, %v67
  %v102 = vunpack.c.l.b16 %v31
  %v103 = vunpack.c.l.b16 %v32
  %v104 = vunpack.c.l.b16 %v33
  %v105 = vunpack.c.l.b16 %v34
  %v106 = vunpack.c.l.b16 %v35
  %v107 = vunpack.c.l.b16 %v36
  %v108 = vunpack.c.l.b16 %v37
  %v109 = vunpack.c.l.b16 %v38
  %v110 = vunpack.c.l.b16 %v39
  %v111 = vunpack.c.l.b16 %v40
  %v112 = vunpack.c.l.b16 %v41
  %v113 = vunpack.c.l.b16 %v42
  %v114 = vunpack.c.l.b16 %v43
  %v115 = vunpack.c.l.b16 %v44
  %v116 = vunpack.c.l.b16 %v45
  %v117 = vunpack.c.l.b16 %v46
  %v118 = vunpack.c.l.b16 %v47
  %v119 = vunpack.c.l.b16 %v48
  %v120 = vunpack.c.l.b16 %v49
  %v121 = vunpack.c.l.b16 %v50
  %v122 = vunpack.c.l.b16 %v51
  %v123 = vunpack.c.l.b16 %v52
  %v124 = vunpack.c.l.b16 %v53
  %v125 = vunpack.c.l.b16 %v54
  %v126 = vunpack.c.l.b16 %v55
  %v127 = vunpack.c.l.b16 %v56
  %v128 = vunpack.c.l.b16 %v57
  %v129 = vunpack.c.l.b16 %v58
  %v130 = vunpack.c.l.b16 %v59
  %v131 = vunpack.c.l.b16 %v60
  %v132 = vunpack.c.l.b16 %v61
  %v133 = vunpack.c.l.b16 %v62
  %v134 = vpack.c.b16 %v103, %v102
  %v135 = vpack.c.b16 %v105, %v104
  %v136 = vpack.c.b16 %v107, %v106
  %v137 = vpack.c.b16 %v109, %v108
  %v138 = vpack.c.b16 %v111, %v110
  %v139 = vpack.c.b16 %v113, %v112
  %v140 = vpack.c.b16 %v115, %v114
  %v141 = vpack.c.b16 %v117, %v116
  %v142 = vpack.c.b16 %v119, %v118
  %v143 = vpack.c.b16 %v121, %v120
  %v144 = vpack.c.b16 %v123, %v122
  %v145 = vpack.c.b16 %v125, %v124
  %v146 = vpack.c.b16 %v127, %v126
  %v147 = vpack.c.b16 %v129, %v128
  %v148 = vpack.c.b16 %v131, %v130
  %v149 = vpack.c.b16 %v133, %v132
  %166 = vmatprep.subr.bf16.mxu0 0
  %167 = vmatpush1.bf16.msra.mxu0 %v134
  %168 = vmatprep.subr.bf16.mxu0 0
  %169 = vmatpush1.bf16.msra.mxu0 %v135
  %170 = vmatprep.subr.bf16.mxu0 0
  %171 = vmatpush1.bf16.msra.mxu0 %v136
  %172 = vmatprep.subr.bf16.mxu0 0
  %173 = vmatpush1.bf16.msra.mxu0 %v137
  %174 = vmatprep.subr.bf16.mxu0 0
  %175 = vmatpush1.bf16.msra.mxu0 %v138
  %176 = vmatprep.subr.bf16.mxu0 0
  %177 = vmatpush1.bf16.msra.mxu0 %v139
  %178 = vmatprep.subr.bf16.mxu0 0
  %179 = vmatpush1.bf16.msra.mxu0 %v140
  %180 = vmatprep.subr.bf16.mxu0 0
  %181 = vmatpush1.bf16.msra.mxu0 %v141
  %182 = vmatprep.subr.bf16.mxu0 0
  %183 = vmatpush1.bf16.msra.mxu0 %v142
  %184 = vmatprep.subr.bf16.mxu0 0
  %185 = vmatpush1.bf16.msra.mxu0 %v143
  %186 = vmatprep.subr.bf16.mxu0 0
  %187 = vmatpush1.bf16.msra.mxu0 %v144
  %188 = vmatprep.subr.bf16.mxu0 0
  %189 = vmatpush1.bf16.msra.mxu0 %v145
  %190 = vmatprep.subr.bf16.mxu0 0
  %191 = vmatpush1.bf16.msra.mxu0 %v146
  %192 = vmatprep.subr.bf16.mxu0 0
  %193 = vmatpush1.bf16.msra.mxu0 %v147
  %194 = vmatprep.subr.bf16.mxu0 0
  %195 = vmatpush1.bf16.msra.mxu0 %v148
  %196 = vmatprep.subr.bf16.mxu0 0
  %197 = vmatpush1.bf16.msra.mxu0 %v149
  %198 = vmatprep.mubr.bf16.mxu0 %v30
  %199 = vmatmul.mubr.bf16.gmra.mrb[0].mxu0 %v29
  %v200 = vpop.f32.mrb[0].mxu0
  %v201 = vadd.f32 %v68, %v200
  %v202 = vpop.f32.mrb[0].mxu0
  %v203 = vpop.f32.mrb[0].mxu0
  %v204 = vpop.f32.mrb[0].mxu0
  %205 = vdwg.mxu0
  %v206 = vmax.f32 %v201, 0.0
  %v207 = vpack.c.bf16 %v206, %v206
  %v208 = vld [vmem:[%s3] sm:$0xf]
  %v209 = vld [vmem:[%s3 + $0x4] sm:$0xf]
  %v210 = vld [vmem:[%s3 + $0x8] sm:$0xf]
  %v211 = vld [vmem:[%s3 + $0xc] sm:$0xf]
  %v212 = vld [vmem:[%s3 + $0x10] sm:$0xf]
  %v213 = vld [vmem:[%s3 + $0x14] sm:$0xf]
  %v214 = vld [vmem:[%s3 + $0x18] sm:$0xf]
  %v215 = vld [vmem:[%s3 + $0x1c] sm:$0xf]
  %v216 = vld [vmem:[%s3 + $0x20] sm:$0xf]
  %v217 = vld [vmem:[%s3 + $0x24] sm:$0xf]
  %v218 = vld [vmem:[%s3 + $0x28] sm:$0xf]
  %v219 = vld [vmem:[%s3 + $0x2c] sm:$0xf]
  %v220 = vld [vmem:[%s3 + $0x30] sm:$0xf]
  %v221 = vld [vmem:[%s3 + $0x34] sm:$0xf]
  %v222 = vld [vmem:[%s3 + $0x38] sm:$0xf]
  %v223 = vld [vmem:[%s3 + $0x3c] sm:$0xf]
  %v224 = vld [vmem:[%s4] sm:$0x1]
  %v226 = vlaneseq
  %v227 = vshrl.u32 %v226, 7
  %v228 = vsub.s32 0, %v227
  %v229 = vrot.slane %v224, %v228
  %v247 = vunpack.c.l.b16 %v208
  %v248 = vunpack.c.l.b16 %v209
  %v249 = vunpack.c.l.b16 %v210
  %v250 = vunpack.c.l.b16 %v211
  %v251 = vunpack.c.l.b16 %v212
  %v252 = vunpack.c.l.b16 %v213
  %v253 = vunpack.c.l.b16 %v214
  %v254 = vunpack.c.l.b16 %v215
  %v255 = vunpack.c.l.b16 %v216
  %v256 = vunpack.c.l.b16 %v217
  %v257 = vunpack.c.l.b16 %v218
  %v258 = vunpack.c.l.b16 %v219
  %v259 = vunpack.c.l.b16 %v220
  %v260 = vunpack.c.l.b16 %v221
  %v261 = vunpack.c.l.b16 %v222
  %v262 = vunpack.c.l.b16 %v223
  %v263 = vpack.c.b16 %v248, %v247
  %v264 = vpack.c.b16 %v250, %v249
  %v265 = vpack.c.b16 %v252, %v251
  %v266 = vpack.c.b16 %v254, %v253
  %v267 = vpack.c.b16 %v256, %v255
  %v268 = vpack.c.b16 %v258, %v257
  %v269 = vpack.c.b16 %v260, %v259
  %v270 = vpack.c.b16 %v262, %v261
  %279 = vmatprep.subr.bf16.mxu0 0
  %280 = vmatpush1.bf16.msra.mxu0 %v263
  %281 = vmatprep.subr.bf16.mxu0 0
  %282 = vmatpush1.bf16.msra.mxu0 %v264
  %283 = vmatprep.subr.bf16.mxu0 0
  %284 = vmatpush1.bf16.msra.mxu0 %v265
  %285 = vmatprep.subr.bf16.mxu0 0
  %286 = vmatpush1.bf16.msra.mxu0 %v266
  %287 = vmatprep.subr.bf16.mxu0 0
  %288 = vmatpush1.bf16.msra.mxu0 %v267
  %289 = vmatprep.subr.bf16.mxu0 0
  %290 = vmatpush1.bf16.msra.mxu0 %v268
  %291 = vmatprep.subr.bf16.mxu0 0
  %292 = vmatpush1.bf16.msra.mxu0 %v269
  %293 = vmatprep.subr.bf16.mxu0 0
  %294 = vmatpush1.bf16.msra.mxu0 %v270
  %295 = vmatprep.subr.bf16.mxu0 0
  %296 = vmatpush1.bf16.msra.mxu0 0
  %297 = vmatprep.subr.bf16.mxu0 0
  %298 = vmatpush1.bf16.msra.mxu0 0
  %299 = vmatprep.subr.bf16.mxu0 0
  %300 = vmatpush1.bf16.msra.mxu0 0
  %301 = vmatprep.subr.bf16.mxu0 0
  %302 = vmatpush1.bf16.msra.mxu0 0
  %303 = vmatprep.subr.bf16.mxu0 0
  %304 = vmatpush1.bf16.msra.mxu0 0
  %305 = vmatprep.subr.bf16.mxu0 0
  %306 = vmatpush1.bf16.msra.mxu0 0
  %307 = vmatprep.subr.bf16.mxu0 0
  %308 = vmatpush1.bf16.msra.mxu0 0
  %309 = vmatprep.subr.bf16.mxu0 0
  %310 = vmatpush1.bf16.msra.mxu0 0
  %311 = vmatprep.mubr.bf16.mxu0 0
  %312 = vmatmul.mubr.bf16.gmra.mrb[0].mxu0 %v207
  %v313 = vpop.f32.mrb[0].mxu0
  %v314 = vadd.f32 %v229, %v313
  %v315 = vpop.f32.mrb[0].mxu0
  %v316 = vpop.f32.mrb[0].mxu0
  %v317 = vpop.f32.mrb[0].mxu0
  %318 = vdwg.mxu0
  %v319 = vmax.f32 %v314, 0.0
  %v320 = vpack.c.bf16 %v319, %v319
  %v321 = vld [vmem:[%s5] sm:$0xf]
  %v322 = vld [vmem:[%s5 + $0x4] sm:$0xf]
  %v323 = vld [vmem:[%s5 + $0x8] sm:$0xf]
  %v324 = vld [vmem:[%s5 + $0xc] sm:$0xf]
  %v325 = vld [vmem:[%s5 + $0x10] sm:$0xf]
  %v326 = vld [vmem:[%s5 + $0x14] sm:$0xf]
  %v327 = vld [vmem:[%s5 + $0x18] sm:$0xf]
  %v328 = vld [vmem:[%s5 + $0x1c] sm:$0xf]
  %v329 = vld [vmem:[%s6] sm:$0x1]
  %v331 = vlaneseq
  %v332 = vshrl.u32 %v331, 7
  %v333 = vsub.s32 0, %v332
  %v334 = vrot.slane %v329, %v333
  %v344 = vunpack.c.l.b16 %v321
  %v345 = vunpack.c.l.b16 %v322
  %v346 = vunpack.c.l.b16 %v323
  %v347 = vunpack.c.l.b16 %v324
  %v348 = vunpack.c.l.b16 %v325
  %v349 = vunpack.c.l.b16 %v326
  %v350 = vunpack.c.l.b16 %v327
  %v351 = vunpack.c.l.b16 %v328
  %v352 = vpack.c.b16 %v345, %v344
  %v353 = vpack.c.b16 %v347, %v346
  %v354 = vpack.c.b16 %v349, %v348
  %v355 = vpack.c.b16 %v351, %v350
  %vm360 = vcmask 523264
  %v362 = vsel %vm360, %v320, 0
  %364 = vmatprep.subr.bf16.mxu0 0
  %365 = vmatpush1.bf16.msra.mxu0 %v352
  %366 = vmatprep.subr.bf16.mxu0 0
  %367 = vmatpush1.bf16.msra.mxu0 %v353
  %368 = vmatprep.subr.bf16.mxu0 0
  %369 = vmatpush1.bf16.msra.mxu0 %v354
  %370 = vmatprep.subr.bf16.mxu0 0
  %371 = vmatpush1.bf16.msra.mxu0 %v355
  %372 = vmatprep.subr.bf16.mxu0 0
  %373 = vmatpush1.bf16.msra.mxu0 0
  %374 = vmatprep.subr.bf16.mxu0 0
  %375 = vmatpush1.bf16.msra.mxu0 0
  %376 = vmatprep.subr.bf16.mxu0 0
  %377 = vmatpush1.bf16.msra.mxu0 0
  %378 = vmatprep.subr.bf16.mxu0 0
  %379 = vmatpush1.bf16.msra.mxu0 0
  %380 = vmatprep.subr.bf16.mxu0 0
  %381 = vmatpush1.bf16.msra.mxu0 0
  %382 = vmatprep.subr.bf16.mxu0 0
  %383 = vmatpush1.bf16.msra.mxu0 0
  %384 = vmatprep.subr.bf16.mxu0 0
  %385 = vmatpush1.bf16.msra.mxu0 0
  %386 = vmatprep.subr.bf16.mxu0 0
  %387 = vmatpush1.bf16.msra.mxu0 0
  %388 = vmatprep.subr.bf16.mxu0 0
  %389 = vmatpush1.bf16.msra.mxu0 0
  %390 = vmatprep.subr.bf16.mxu0 0
  %391 = vmatpush1.bf16.msra.mxu0 0
  %392 = vmatprep.subr.bf16.mxu0 0
  %393 = vmatpush1.bf16.msra.mxu0 0
  %394 = vmatprep.subr.bf16.mxu0 0
  %395 = vmatpush1.bf16.msra.mxu0 0
  %396 = vmatprep.mubr.bf16.mxu0 0
  %397 = vmatmul.mubr.bf16.gmra.mrb[0].mxu0 %v362
  %v398 = vpop.f32.mrb[0].mxu0
  %v399 = vadd.f32 %v334, %v398
  %v400 = vpop.f32.mrb[0].mxu0
  %v401 = vpop.f32.mrb[0].mxu0
  %v402 = vpop.f32.mrb[0].mxu0
  %403 = vdwg.mxu0
  %404 = vst [vmem:[%s7] sm:$0xff] %v399
  // Predicated region
  $region30: #{decoder_forward.1} parent=0 // pred_check
    _
  $region31: #{decoder_forward.1} parent=0 // pred_check_branch
    %406 = sbr.rel (0) target = $region33
  $region32: #{decoder_forward.1} parent=0 // pred_region
    _
  $region33: #{decoder_forward.1} parent=0 // pred_fallthru
    _
  // Predicated region
  $region34: #{decoder_forward.1} parent=0 // pred_check
    _
  $region35: #{decoder_forward.1} parent=0 // pred_check_branch
    %408 = sbr.rel (0) target = $region37
  $region36: #{decoder_forward.1} parent=0 // pred_region
    _
  $region37: #{decoder_forward.1} parent=0 // pred_fallthru
    _

</llo_original>
